<compile_context>
chip_gen: v7x
topology: tpu7x:2x2x1
jax: 0.10.0
libtpu: 0.0.40
codegen_flags: <defaults>
</compile_context>

<pallas_src>
import jax
import jax.numpy as jnp
from jax.experimental import pallas as pl
from jax.experimental.pallas import tpu as pltpu  # noqa: F401  (TPU backend)


def _make_dbn_kernel(num_layers):
    def dbn_kernel(*refs):
        x_ref = refs[0]
        w_refs = refs[1:1 + num_layers]
        b_refs = refs[1 + num_layers:1 + 2 * num_layers]
        o_ref = refs[1 + 2 * num_layers]

        h = x_ref[...].astype(jnp.float32)            # (B, d0) activation, f32
        for l in range(num_layers):                   # static unroll (L is tiny)
            # MXU: bf16 x bf16 -> f32 accumulate.
            y = jnp.dot(h.astype(jnp.bfloat16), w_refs[l][...],
                        preferred_element_type=jnp.float32)
            y = y + b_refs[l][...]                    # (1, d) broadcast, VPU, f32
            h = jnp.maximum(y, 0.0)                   # ReLU, VPU, f32
        o_ref[...] = h.astype(o_ref.dtype)
    return dbn_kernel


def pack_dbn_params(params):
    """Per-layer natural-shape arrays: bf16 weights (in, out), f32 biases (1, out)."""
    ws = [w.astype(jnp.bfloat16) for (w, _) in params]
    bs = [b.reshape(1, -1).astype(jnp.float32) for (_, b) in params]
    return ws, bs


@jax.jit
def dbn_forward(x, ws, bs):
    """Fused DBN forward: relu(... relu(x @ W0 + b0) ... @ W_{L-1} + b_{L-1})."""
    B = x.shape[0]
    L = len(ws)
    out_size = ws[-1].shape[1]

    flops = 2 * B * sum(int(w.shape[0]) * int(w.shape[1]) for w in ws)
    bytes_accessed = (4 * int(x.size)
                      + sum(2 * int(w.size) for w in ws)    # bf16 weights
                      + sum(4 * int(b.size) for b in bs)
                      + 4 * B * out_size)
    cost = pl.CostEstimate(flops=flops, transcendentals=0,
                           bytes_accessed=bytes_accessed)

    # Full-array blocks at natural shapes (exempt from the (8,128) rule);
    # everything fits trivially in VMEM, so no grid is needed.
    in_specs = ([pl.BlockSpec(x.shape, lambda: (0, 0))]
                + [pl.BlockSpec(w.shape, lambda: (0, 0)) for w in ws]
                + [pl.BlockSpec(b.shape, lambda: (0, 0)) for b in bs])

    return pl.pallas_call(
        _make_dbn_kernel(L),
        out_shape=jax.ShapeDtypeStruct((B, out_size), jnp.float32),
        in_specs=in_specs,
        out_specs=pl.BlockSpec((B, out_size), lambda: (0, 0)),
        cost_estimate=cost,
    )(x, *ws, *bs)


def init_dbn_params(key, input_size, hidden_sizes):
    """Deterministic init mimicking PyTorch nn.Linear default U(-1/sqrt(fan_in), +)."""
    params = []
    prev = input_size
    for h in hidden_sizes:
        key, kw, kb = jax.random.split(key, 3)
        bound = 1.0 / float(prev) ** 0.5
        w = jax.random.uniform(kw, (prev, h), minval=-bound, maxval=bound,
                               dtype=jnp.float32)              # stored as (in, out)
        b = jax.random.uniform(kb, (1, h), minval=-bound, maxval=bound,
                               dtype=jnp.float32)
        params.append((w, b))
        prev = h
    return params


def dbn_reference_f32(x, params):
    """Pure-JAX f32 reference (same math as the PyTorch DBN.forward)."""
    h = x
    for w, b in params:
        h = jnp.maximum(
            jnp.dot(h, w, precision=jax.lax.Precision.HIGHEST) + b, 0.0)
    return h


def dbn_reference_bf16(x, params):
    """Reference matching the kernel's numerics: bf16 MXU operands, f32 epilogue."""
    h = x.astype(jnp.float32)
    for w, b in params:
        y = jnp.dot(h.astype(jnp.bfloat16), w.astype(jnp.bfloat16),
                    preferred_element_type=jnp.float32)
        h = jnp.maximum(y + b, 0.0)
    return h


if __name__ == "__main__":
    # Same vocabulary construction as the PyTorch script (determines input_size).
    text_data = '這是範例文本，用於展示如何建立語言模型。我們將使用前幾個詞預測下一個詞。'
    word_list = sorted(set(text_data))
    input_size = len(word_list)          # number of unique characters (32)
    hidden_sizes = [32, 16]              # small DBN-style hidden stack
    batch = 4

    key = jax.random.PRNGKey(0)
    key, kparams, kx = jax.random.split(key, 3)
    params = init_dbn_params(kparams, input_size, hidden_sizes)

    # Example input: a batch of (soft) one-hot-like vectors over the vocabulary.
    x = jax.random.uniform(kx, (batch, input_size), dtype=jnp.float32)

    ws, bs = pack_dbn_params(params)

    out = dbn_forward(x, ws, bs)
    jax.block_until_ready(out)

    # Correctness checks.
    ref_bf16 = dbn_reference_bf16(x, params)   # same numerics as the kernel
    ref_f32 = dbn_reference_f32(x, params)     # full-precision semantics
    assert out.shape == (batch, hidden_sizes[-1])
    assert bool(jnp.all(out >= 0.0))                               # ReLU output
    assert bool(jnp.allclose(out, ref_bf16, rtol=1e-3, atol=1e-3))  # tight
    # Loose tolerance documents the deliberate bf16 weight/activation rounding.
    assert bool(jnp.allclose(out, ref_f32, rtol=2e-2, atol=3e-2))

    print("KERNEL_OK")
</pallas_src>

<mosaic_0001>
module attributes {stable_mosaic.version = 11 : i64} {
  func.func @dbn_kernel(%arg0: memref<4x32xf32, #tpu.memory_space<vmem>>, %arg1: memref<32x32xbf16, #tpu.memory_space<vmem>>, %arg2: memref<32x16xbf16, #tpu.memory_space<vmem>>, %arg3: memref<1x32xf32, #tpu.memory_space<vmem>>, %arg4: memref<1x16xf32, #tpu.memory_space<vmem>>, %arg5: memref<4x16xf32, #tpu.memory_space<vmem>>) attributes {dimension_semantics = [], scalar_prefetch = 0 : i64, scratch_operands = 0 : i64, tpu.core_type = #tpu.core_type<tc>} {
    %c0 = arith.constant 0 : index
    %c0_0 = arith.constant 0 : index
    %0 = vector.load %arg0[%c0, %c0_0] : memref<4x32xf32, #tpu.memory_space<vmem>>, vector<4x32xf32>
    %1 = arith.truncf %0 : vector<4x32xf32> to vector<4x32xbf16>
    %c0_1 = arith.constant 0 : index
    %c0_2 = arith.constant 0 : index
    %2 = vector.load %arg1[%c0_1, %c0_2] : memref<32x32xbf16, #tpu.memory_space<vmem>>, vector<32x32xbf16>
    %cst = arith.constant dense<0.000000e+00> : vector<4x32xf32>
    %3 = tpu.matmul %1, %2, %cst {dimension_numbers = #tpu.dot_dimension_numbers<[1], [0], [0], [1], [0, 0, 1, 1], [], []>} : vector<4x32xbf16>, vector<32x32xbf16>, vector<4x32xf32> -> vector<4x32xf32>
    %c0_3 = arith.constant 0 : index
    %c0_4 = arith.constant 0 : index
    %4 = vector.load %arg3[%c0_3, %c0_4] : memref<1x32xf32, #tpu.memory_space<vmem>>, vector<1x32xf32>
    %5 = vector.broadcast %4 : vector<1x32xf32> to vector<4x32xf32>
    %6 = arith.addf %3, %5 : vector<4x32xf32>
    %cst_5 = arith.constant 0.000000e+00 : f32
    %7 = vector.broadcast %cst_5 : f32 to vector<4x32xf32>
    %8 = arith.maximumf %6, %7 : vector<4x32xf32>
    %9 = arith.truncf %8 : vector<4x32xf32> to vector<4x32xbf16>
    %c0_6 = arith.constant 0 : index
    %c0_7 = arith.constant 0 : index
    %10 = vector.load %arg2[%c0_6, %c0_7] : memref<32x16xbf16, #tpu.memory_space<vmem>>, vector<32x16xbf16>
    %cst_8 = arith.constant dense<0.000000e+00> : vector<4x16xf32>
    %11 = tpu.matmul %9, %10, %cst_8 {dimension_numbers = #tpu.dot_dimension_numbers<[1], [0], [0], [1], [0, 0, 1, 1], [], []>} : vector<4x32xbf16>, vector<32x16xbf16>, vector<4x16xf32> -> vector<4x16xf32>
    %c0_9 = arith.constant 0 : index
    %c0_10 = arith.constant 0 : index
    %12 = vector.load %arg4[%c0_9, %c0_10] : memref<1x16xf32, #tpu.memory_space<vmem>>, vector<1x16xf32>
    %13 = vector.broadcast %12 : vector<1x16xf32> to vector<4x16xf32>
    %14 = arith.addf %11, %13 : vector<4x16xf32>
    %cst_11 = arith.constant 0.000000e+00 : f32
    %15 = vector.broadcast %cst_11 : f32 to vector<4x16xf32>
    %16 = arith.maximumf %14, %15 : vector<4x16xf32>
    %c0_12 = arith.constant 0 : index
    %c0_13 = arith.constant 0 : index
    %17 = vector.load %arg5[%c0_12, %c0_13] : memref<4x16xf32, #tpu.memory_space<vmem>>, vector<4x16xf32>
    tpu.vector_store %arg5[%c0_12, %c0_13], %16 {strides = array<i32>} : memref<4x16xf32, #tpu.memory_space<vmem>>, vector<4x16xf32>,
    return
  }
}

</mosaic_0001>

<llo_original>
// kernel: dbn_forward.1
$region0: #{dbn_forward.1}
  #allocation0 [shape = 'u32[]', space=smem, size = 0x4, offset = 0x4, fixed_abs, tag = 'smem constant byte address 0x4 - core index']
  #allocation1 [shape = 'u32[144,128]{1,0:T(1,128)}', space=vmem, size = 0x12000, scoped, tag = 'internal scratch']
  %s0 = inlined_call_operand.vmem [shape: f32[4,32], index: 0, kind: input, shape index: {}]
  %s1 = inlined_call_operand.vmem [shape: bf16[32,32], index: 1, kind: input, shape index: {}]
  %s2 = inlined_call_operand.vmem [shape: bf16[32,16], index: 2, kind: input, shape index: {}]
  %s3 = inlined_call_operand.vmem [shape: f32[1,32], index: 3, kind: input, shape index: {}]
  %s4 = inlined_call_operand.vmem [shape: f32[1,16], index: 4, kind: input, shape index: {}]
  %s5 = inlined_call_operand.hbm [shape: f32[4,16], index: 5, kind: output, shape index: {}]
  %s6 = sld [smem:[#allocation0]]
  $region30: #{dbn_forward.1} parent=0
    _
  %s8 = ssub.s32 1, %s6
  %s9 = scalar_select 0, %s8, %s6
  $region1: #{dbn_forward.1} parent=0
    #allocation2 [shape = 'u8[2048]{0}', space=vmem, size = 0x800, scoped, tag = 'output window, operand 0, single buffered']
    #allocation3 [shape = 's32[1]{0}', space=sflag, size = 0x4, scoped, tag = 'scoped memory for dbn_forward.1']
    %10 = vsyncpa [#allocation3], 0
    // Predicated region
    $region2: #{dbn_forward.1} parent=1 // pred_check
      _
    $region3: #{dbn_forward.1} parent=1 // pred_check_branch
      %12 = sbr.rel (0) target = $region5
    $region4: #{dbn_forward.1} parent=1 // pred_region
      _
    $region5: #{dbn_forward.1} parent=1 // pred_fallthru
      _
    // Predicated region
    $region6: #{dbn_forward.1} parent=1 // pred_check
      _
    $region7: #{dbn_forward.1} parent=1 // pred_check_branch
      %14 = sbr.rel (0) target = $region9
    $region8: #{dbn_forward.1} parent=1 // pred_region
      _
    $region9: #{dbn_forward.1} parent=1 // pred_fallthru
      _
    // Predicated region
    $region10: #{dbn_forward.1} parent=1 // pred_check
      _
    $region11: #{dbn_forward.1} parent=1 // pred_check_branch
      %16 = sbr.rel (0) target = $region13
    $region12: #{dbn_forward.1} parent=1 // pred_region
      _
    $region13: #{dbn_forward.1} parent=1 // pred_fallthru
      _
    // Predicated region
    $region14: #{dbn_forward.1} parent=1 // pred_check
      _
    $region15: #{dbn_forward.1} parent=1 // pred_check_branch
      %18 = sbr.rel (0) target = $region17
    $region16: #{dbn_forward.1} parent=1 // pred_region
      _
    $region17: #{dbn_forward.1} parent=1 // pred_fallthru
      _
    // Predicated region
    $region18: #{dbn_forward.1} parent=1 // pred_check
      _
    $region19: #{dbn_forward.1} parent=1 // pred_check_branch
      %20 = sbr.rel (0) target = $region21
    $region20: #{dbn_forward.1} parent=1 // pred_region
      _
    $region21: #{dbn_forward.1} parent=1 // pred_fallthru
      _
    %v22 = vld [vmem:[%s0] sm:$0xf]
    %v23 = vpack.c.bf16 %v22, %v22
    %v24 = vld [vmem:[%s1] sm:$0xf]
    %v25 = vld [vmem:[%s1 + $0x4] sm:$0xf]
    %v26 = vld [vmem:[%s1 + $0x8] sm:$0xf]
    %v27 = vld [vmem:[%s1 + $0xc] sm:$0xf]
    %v28 = vld [vmem:[%s3] sm:$0x1]
    %v30 = vlaneseq
    %v31 = vshrl.u32 %v30, 7
    %v32 = vsub.s32 0, %v31
    %v33 = vrot.slane %v28, %v32
    %v39 = vunpack.c.l.b16 %v24
    %v40 = vunpack.c.l.b16 %v25
    %v41 = vunpack.c.l.b16 %v26
    %v42 = vunpack.c.l.b16 %v27
    %v43 = vpack.c.b16 %v40, %v39
    %v44 = vpack.c.b16 %v42, %v41
    %vm47 = vcmask 261120
    %v49 = vsel %vm47, %v23, 0
    %51 = vmatprep.subr.bf16.mxu0 0
    %52 = vmatpush1.bf16.msra.mxu0 %v43
    %53 = vmatprep.subr.bf16.mxu0 0
    %54 = vmatpush1.bf16.msra.mxu0 %v44
    %55 = vmatprep.subr.bf16.mxu0 0
    %56 = vmatpush1.bf16.msra.mxu0 0
    %57 = vmatprep.subr.bf16.mxu0 0
    %58 = vmatpush1.bf16.msra.mxu0 0
    %59 = vmatprep.subr.bf16.mxu0 0
    %60 = vmatpush1.bf16.msra.mxu0 0
    %61 = vmatprep.subr.bf16.mxu0 0
    %62 = vmatpush1.bf16.msra.mxu0 0
    %63 = vmatprep.subr.bf16.mxu0 0
    %64 = vmatpush1.bf16.msra.mxu0 0
    %65 = vmatprep.subr.bf16.mxu0 0
    %66 = vmatpush1.bf16.msra.mxu0 0
    %67 = vmatprep.subr.bf16.mxu0 0
    %68 = vmatpush1.bf16.msra.mxu0 0
    %69 = vmatprep.subr.bf16.mxu0 0
    %70 = vmatpush1.bf16.msra.mxu0 0
    %71 = vmatprep.subr.bf16.mxu0 0
    %72 = vmatpush1.bf16.msra.mxu0 0
    %73 = vmatprep.subr.bf16.mxu0 0
    %74 = vmatpush1.bf16.msra.mxu0 0
    %75 = vmatprep.subr.bf16.mxu0 0
    %76 = vmatpush1.bf16.msra.mxu0 0
    %77 = vmatprep.subr.bf16.mxu0 0
    %78 = vmatpush1.bf16.msra.mxu0 0
    %79 = vmatprep.subr.bf16.mxu0 0
    %80 = vmatpush1.bf16.msra.mxu0 0
    %81 = vmatprep.subr.bf16.mxu0 0
    %82 = vmatpush1.bf16.msra.mxu0 0
    %83 = vmatprep.mubr.bf16.mxu0 0
    %84 = vmatmul.mubr.bf16.gmra.mrb[0].mxu0 %v49
    %v85 = vpop.f32.mrb[0].mxu0
    %v86 = vadd.f32 %v33, %v85
    %v87 = vpop.f32.mrb[0].mxu0
    %v88 = vpop.f32.mrb[0].mxu0
    %v89 = vpop.f32.mrb[0].mxu0
    %90 = vdwg.mxu0
    %v91 = vmax.f32 %v86, 0.0
    %v92 = vpack.c.bf16 %v91, %v91
    %v93 = vld [vmem:[%s2] sm:$0xf]
    %v94 = vld [vmem:[%s2 + $0x4] sm:$0xf]
    %v95 = vld [vmem:[%s2 + $0x8] sm:$0xf]
    %v96 = vld [vmem:[%s2 + $0xc] sm:$0xf]
    %v97 = vld [vmem:[%s4] sm:$0x1]
    %v99 = vlaneseq
    %v100 = vshrl.u32 %v99, 7
    %v101 = vsub.s32 0, %v100
    %v102 = vrot.slane %v97, %v101
    %v108 = vunpack.c.l.b16 %v93
    %v109 = vunpack.c.l.b16 %v94
    %v110 = vunpack.c.l.b16 %v95
    %v111 = vunpack.c.l.b16 %v96
    %v112 = vpack.c.b16 %v109, %v108
    %v113 = vpack.c.b16 %v111, %v110
    %v117 = vsel %vm47, %v92, 0
    %119 = vmatprep.subr.bf16.mxu0 0
    %120 = vmatpush1.bf16.msra.mxu0 %v112
    %121 = vmatprep.subr.bf16.mxu0 0
    %122 = vmatpush1.bf16.msra.mxu0 %v113
    %123 = vmatprep.subr.bf16.mxu0 0
    %124 = vmatpush1.bf16.msra.mxu0 0
    %125 = vmatprep.subr.bf16.mxu0 0
    %126 = vmatpush1.bf16.msra.mxu0 0
    %127 = vmatprep.subr.bf16.mxu0 0
    %128 = vmatpush1.bf16.msra.mxu0 0
    %129 = vmatprep.subr.bf16.mxu0 0
    %130 = vmatpush1.bf16.msra.mxu0 0
    %131 = vmatprep.subr.bf16.mxu0 0
    %132 = vmatpush1.bf16.msra.mxu0 0
    %133 = vmatprep.subr.bf16.mxu0 0
    %134 = vmatpush1.bf16.msra.mxu0 0
    %135 = vmatprep.subr.bf16.mxu0 0
    %136 = vmatpush1.bf16.msra.mxu0 0
    %137 = vmatprep.subr.bf16.mxu0 0
    %138 = vmatpush1.bf16.msra.mxu0 0
    %139 = vmatprep.subr.bf16.mxu0 0
    %140 = vmatpush1.bf16.msra.mxu0 0
    %141 = vmatprep.subr.bf16.mxu0 0
    %142 = vmatpush1.bf16.msra.mxu0 0
    %143 = vmatprep.subr.bf16.mxu0 0
    %144 = vmatpush1.bf16.msra.mxu0 0
    %145 = vmatprep.subr.bf16.mxu0 0
    %146 = vmatpush1.bf16.msra.mxu0 0
    %147 = vmatprep.subr.bf16.mxu0 0
    %148 = vmatpush1.bf16.msra.mxu0 0
    %149 = vmatprep.subr.bf16.mxu0 0
    %150 = vmatpush1.bf16.msra.mxu0 0
    %151 = vmatprep.mubr.bf16.mxu0 0
    %152 = vmatmul.mubr.bf16.gmra.mrb[0].mxu0 %v117
    %v153 = vpop.f32.mrb[0].mxu0
    %v154 = vadd.f32 %v102, %v153
    %v155 = vpop.f32.mrb[0].mxu0
    %v156 = vpop.f32.mrb[0].mxu0
    %v157 = vpop.f32.mrb[0].mxu0
    %158 = vdwg.mxu0
    %v159 = vmax.f32 %v154, 0.0
    %vm160 = vcmask 125952
    %161 = vst.msk [vmem:[#allocation2] sm:$0xf] %vm160, %v159
    // Predicated region
    $region22: #{dbn_forward.1} parent=1 // pred_check
      _
    $region23: #{dbn_forward.1} parent=1 // pred_check_branch
      %163 = sbr.rel (0) target = $region25
    $region24: #{dbn_forward.1} parent=1 // pred_region
      %s165 = ssub.s32 64, 64
      %166 = vsyncadd [#allocation3], %s165
      %s168 = sshll.u32 [#allocation2], 4
      %s169 = int_to_ptr.vmem [resolvable:$true] %s168
      %171 = dma.vmem_to_hbm [thread:$0]  %s169, 64, %s5, [#allocation3]
    $region25: #{dbn_forward.1} parent=1 // pred_fallthru
      _
    // Predicated region
    $region26: #{dbn_forward.1} parent=1 // pred_check
      _
    $region27: #{dbn_forward.1} parent=1 // pred_check_branch
      %173 = sbr.rel (0) target = $region29
    $region28: #{dbn_forward.1} parent=1 // pred_region
      %174 = dma.done [#allocation3], 64
    $region29: #{dbn_forward.1} parent=1 // pred_fallthru
      _
    %175 = vsyncpa [#allocation3], 1

</llo_original>
